<compile_context>
chip_gen: v7x
topology: tpu7x:2x2x1
jax: 0.10.0
libtpu: 0.0.40
codegen_flags: <defaults>
</compile_context>

<pallas_src>
import jax
import jax.numpy as jnp
from jax import lax
from jax.experimental import pallas as pl
from jax.experimental.pallas import tpu as pltpu


def _round_up(x, m):
    return (x + m - 1) // m * m


def _vmem_capacity_bytes():
    """Per-TensorCore VMEM capacity; falls back to the smallest (v7x: 64 MiB)."""
    try:
        info = pltpu.get_tpu_info()
        for attr in ("vmem_capacity_bytes", "vmem_size_bytes", "vmem_bytes"):
            cap = getattr(info, attr, None)
            if cap:
                return int(cap)
    except Exception:
        pass
    return 64 * 1024 * 1024


def _av_kernel_single(a_ref, v_ref, o_ref):
    # Single K step: no accumulator scratch, no init/finalize branches.
    o_ref[...] = jnp.einsum(
        "gqk,gkd->gqd", a_ref[...], v_ref[...],
        preferred_element_type=jnp.float32,
    ).astype(o_ref.dtype)


def _make_multi_k_kernel(tk, Tk):
    need_mask = (Tk % tk) != 0  # static: only if K has a ragged tail

    def kernel(a_ref, v_ref, o_ref, acc_ref):
        k = pl.program_id(2)

        @pl.when(k == 0)
        def _():
            acc_ref[...] = jnp.zeros_like(acc_ref)

        a = a_ref[...]
        v = v_ref[...]
        if need_mask:
            # Last K tile extends past Tk: the out-of-bounds region is garbage,
            # so zero both operands (guards against NaN garbage as well).
            base = k * tk
            kcol = lax.broadcasted_iota(jnp.int32, a.shape, 2) + base
            a = jnp.where(kcol < Tk, a, jnp.zeros_like(a))
            krow = lax.broadcasted_iota(jnp.int32, v.shape, 1) + base
            v = jnp.where(krow < Tk, v, jnp.zeros_like(v))

        acc_ref[...] += jnp.einsum(
            "gqk,gkd->gqd", a, v, preferred_element_type=jnp.float32)

        @pl.when(k == pl.num_programs(2) - 1)
        def _():
            o_ref[...] = acc_ref[...].astype(o_ref.dtype)

    return kernel


def av_combine(A, v, *, g_max=8, tq_max=512):
    """out[b,h,q,d] = sum_k A[b,h,q,k] * v[b,h,k,d]  (AVCombiner forward)."""
    B, H, Tq, Tk = A.shape
    Bv, Hv, Tk2, D = v.shape
    assert (B, H, Tk) == (Bv, Hv, Tk2), "A / v shape mismatch"
    BH = B * H

    out_dtype = jnp.result_type(A.dtype, v.dtype)
    isz_a = jnp.dtype(A.dtype).itemsize
    isz_v = jnp.dtype(v.dtype).itemsize
    isz_o = jnp.dtype(out_dtype).itemsize

    # Sublane granule for second-to-last block dims (8 f32, 16 bf16, 32 int8).
    sub = max(8, 32 // min(isz_a, isz_o))

    # --- per-generation VMEM budget ------------------------------------------
    vmem_cap = _vmem_capacity_bytes()                # 128 MiB v5e/v6e, 64 MiB v7x
    vmem_limit = min(int(vmem_cap * 0.8), 100 * 1024 * 1024)
    budget = int(vmem_limit * 0.85)                  # headroom for compiler scratch

    # --- tiling ---------------------------------------------------------------
    # Balanced head-group size (leading dim: no granule constraint).
    G = BH if BH <= g_max else pl.cdiv(BH, pl.cdiv(BH, g_max))
    # Balanced Q tile (full dim when small, else a multiple of the sublane granule).
    tq = Tq if Tq <= tq_max else _round_up(pl.cdiv(Tq, pl.cdiv(Tq, tq_max)), sub)

    # Megacore (v7x): guarantee >= 2 steps on the parallel grid axes when possible.
    if pl.cdiv(BH, G) * pl.cdiv(Tq, tq) < 2:
        if BH >= 2:
            G = pl.cdiv(BH, 2)
        elif Tq >= 2 * sub:
            tq = _round_up(pl.cdiv(Tq, 2), sub)

    def single_k_bytes(G_, tq_):
        # A + v + out tiles, all double-buffered; no f32 accumulator needed.
        return 2 * G_ * (tq_ * Tk * isz_a + Tk * D * isz_v + tq_ * D * isz_o)

    def multi_k_bytes(G_, tq_, tk_):
        return (2 * G_ * tq_ * tk_ * isz_a + 2 * G_ * tk_ * D * isz_v
                + 2 * G_ * tq_ * D * isz_o + G_ * tq_ * D * 4)

    # Prefer a single K step (v stays VMEM-resident across Q tiles, no acc RMW);
    # shrink the Q tile first to make it fit.
    tq_s = tq
    floor = min(Tq, max(sub, 128))
    while single_k_bytes(G, tq_s) > budget and tq_s > floor:
        tq_s = max(floor, _round_up(tq_s // 2, sub))
    single_k = single_k_bytes(G, tq_s) <= budget

    if single_k:
        tq = tq_s
        n_g, n_q = pl.cdiv(BH, G), pl.cdiv(Tq, tq)
        grid = (n_g, n_q)
        kernel = _av_kernel_single
        in_specs = [
            pl.BlockSpec((G, tq, Tk), lambda g, q: (g, q, 0)),
            pl.BlockSpec((G, Tk, D), lambda g, q: (g, 0, 0)),   # const over q -> no re-DMA
        ]
        out_spec = pl.BlockSpec((G, tq, D), lambda g, q: (g, q, 0))
        scratch = []
        dims = ("parallel", "parallel")
        a_bytes = n_g * G * n_q * tq * Tk * isz_a
        v_bytes = n_g * G * Tk * D * isz_v              # fetched once per head group
    else:
        # Keep the big Q tile (fewer v re-reads); shrink only if even tk=128 won't fit.
        while multi_k_bytes(G, tq, 128) > budget and tq > sub:
            tq = max(sub, _round_up(tq // 2, sub))
        while multi_k_bytes(G, tq, 128) > budget and G > 1:
            G = max(1, G // 2)

        # Largest K tile (multiple of 128) that fits the budget, then balance.
        denom = 2 * G * (tq * isz_a + D * isz_v)
        avail = budget - 2 * G * tq * D * isz_o - G * tq * D * 4
        tk_cap = max(128, (avail // denom) // 128 * 128) if avail > 0 else 128
        tk_cap = min(tk_cap, _round_up(Tk, 128), 4096)
        tk = _round_up(pl.cdiv(Tk, pl.cdiv(Tk, tk_cap)), 128)

        n_g, n_q, n_k = pl.cdiv(BH, G), pl.cdiv(Tq, tq), pl.cdiv(Tk, tk)
        grid = (n_g, n_q, n_k)
        kernel = _make_multi_k_kernel(tk, Tk)
        in_specs = [
            pl.BlockSpec((G, tq, tk), lambda g, q, k: (g, q, k)),
            pl.BlockSpec((G, tk, D), lambda g, q, k: (g, k, 0)),
        ]
        out_spec = pl.BlockSpec((G, tq, D), lambda g, q, k: (g, q, 0))
        scratch = [pltpu.VMEM((G, tq, D), jnp.float32)]
        dims = ("parallel", "parallel", "arbitrary")
        a_bytes = n_g * G * n_q * tq * n_k * tk * isz_a
        v_bytes = n_g * G * n_q * n_k * tk * D * isz_v  # re-read once per Q tile

    out_bytes = pl.cdiv(BH, G) * G * pl.cdiv(Tq, tq) * tq * D * isz_o
    cost = pl.CostEstimate(
        flops=2 * BH * Tq * Tk * D,
        transcendentals=0,
        bytes_accessed=int(a_bytes + v_bytes + out_bytes),
    )

    # Trivial (layout-preserving) reshapes: no HBM copies.
    A3 = A.reshape(BH, Tq, Tk)
    v3 = v.reshape(BH, Tk, D)

    out = pl.pallas_call(
        kernel,
        out_shape=jax.ShapeDtypeStruct((BH, Tq, D), out_dtype),
        grid=grid,
        in_specs=in_specs,
        out_specs=out_spec,
        scratch_shapes=scratch,
        compiler_params=pltpu.CompilerParams(
            dimension_semantics=dims,
            vmem_limit_bytes=vmem_limit,
        ),
        cost_estimate=cost,
    )(A3, v3)

    return out.reshape(B, H, Tq, D)


if __name__ == "__main__":
    key = jax.random.PRNGKey(0)
    kA, kv = jax.random.split(key)

    B, H, Tq, Tk, D = 2, 4, 8, 8, 32

    # Attention weights: softmax-normalized so they look like a real A.
    logits = jax.random.normal(kA, (B, H, Tq, Tk), dtype=jnp.float32)
    A = jax.nn.softmax(logits, axis=-1)
    v = jax.random.normal(kv, (B, H, Tk, D), dtype=jnp.float32)

    out = jax.block_until_ready(av_combine(A, v))
    ref = jnp.einsum("bhqk,bhkd->bhqd", A, v)
    assert out.shape == (B, H, Tq, D)
    assert jnp.allclose(out, ref, atol=1e-5, rtol=1e-5)

    # bf16 inputs: full-rate MXU path, f32 accumulation, bf16 output.
    out_bf = jax.block_until_ready(
        av_combine(A.astype(jnp.bfloat16), v.astype(jnp.bfloat16)))
    assert out_bf.dtype == jnp.bfloat16
    assert jnp.allclose(out_bf.astype(jnp.float32), ref, atol=5e-2, rtol=5e-2)

    print("KERNEL_OK")
</pallas_src>

<mosaic_0001>
module attributes {stable_mosaic.version = 11 : i64} {
  func.func @_av_kernel_single(%arg0: i32, %arg1: i32, %arg2: memref<4x8x8xf32, #tpu.memory_space<vmem>>, %arg3: memref<4x8x32xf32, #tpu.memory_space<vmem>>, %arg4: memref<4x8x32xf32, #tpu.memory_space<vmem>>) attributes {dimension_semantics = [#tpu.dimension_semantics<parallel>, #tpu.dimension_semantics<parallel>], iteration_bounds = array<i64: 2, 1>, scalar_prefetch = 0 : i64, scratch_operands = 0 : i64, tpu.core_type = #tpu.core_type<tc>, window_params = [{transform_indices = @transform_0, window_bounds = array<i64: 4, 8, 8>}, {transform_indices = @transform_1, window_bounds = array<i64: 4, 8, 32>}, {transform_indices = @transform_2, window_bounds = array<i64: 4, 8, 32>}]} {
    %c0 = arith.constant 0 : index
    %c0_0 = arith.constant 0 : index
    %c0_1 = arith.constant 0 : index
    %0 = vector.load %arg2[%c0, %c0_0, %c0_1] : memref<4x8x8xf32, #tpu.memory_space<vmem>>, vector<4x8x8xf32>
    %c0_2 = arith.constant 0 : index
    %c0_3 = arith.constant 0 : index
    %c0_4 = arith.constant 0 : index
    %1 = vector.load %arg3[%c0_2, %c0_3, %c0_4] : memref<4x8x32xf32, #tpu.memory_space<vmem>>, vector<4x8x32xf32>
    "tpu.trace_start"() <{level = 10 : i32, message = "gqk,gkd->gqd"}> : () -> ()
    %cst = arith.constant dense<0.000000e+00> : vector<4x8x32xf32>
    %2 = tpu.matmul %0, %1, %cst {dimension_numbers = #tpu.dot_dimension_numbers<[2], [1], [1], [2], [0, 0, 0, 1, 1, 2], [0], [0]>} : vector<4x8x8xf32>, vector<4x8x32xf32>, vector<4x8x32xf32> -> vector<4x8x32xf32>
    "tpu.trace_stop"() : () -> ()
    %c0_5 = arith.constant 0 : index
    %c0_6 = arith.constant 0 : index
    %c0_7 = arith.constant 0 : index
    %3 = vector.load %arg4[%c0_5, %c0_6, %c0_7] : memref<4x8x32xf32, #tpu.memory_space<vmem>>, vector<4x8x32xf32>
    tpu.vector_store %arg4[%c0_5, %c0_6, %c0_7], %2 {strides = array<i32>} : memref<4x8x32xf32, #tpu.memory_space<vmem>>, vector<4x8x32xf32>,
    return
  }
  func.func @transform_0(%arg0: i32, %arg1: i32) -> (i32, i32, i32) {
    %c0_i32 = arith.constant 0 : i32
    %c0_i32_0 = arith.constant 0 : i32
    return %arg0, %arg1, %c0_i32 : i32, i32, i32
  }
  func.func @transform_1(%arg0: i32, %arg1: i32) -> (i32, i32, i32) {
    %c0_i32 = arith.constant 0 : i32
    %c0_i32_0 = arith.constant 0 : i32
    %c0_i32_1 = arith.constant 0 : i32
    return %arg0, %c0_i32, %c0_i32_0 : i32, i32, i32
  }
  func.func @transform_2(%arg0: i32, %arg1: i32) -> (i32, i32, i32) {
    %c0_i32 = arith.constant 0 : i32
    %c0_i32_0 = arith.constant 0 : i32
    return %arg0, %arg1, %c0_i32 : i32, i32, i32
  }
}

</mosaic_0001>

<llo_original>
// kernel: tpu_custom_call.1
$region0: #{tpu_custom_call.1}
  #allocation0 [shape = 'u32[]', space=smem, size = 0x4, offset = 0x4, fixed_abs, tag = 'smem constant byte address 0x4 - core index']
  #allocation1 [shape = 'u32[144,128]{1,0:T(1,128)}', space=vmem, size = 0x12000, scoped, tag = 'internal scratch']
  %s0 = inlined_call_operand.hbm [shape: f32[8,8,8], index: 0, kind: input, shape index: {}]
  %s1 = inlined_call_operand.hbm [shape: f32[8,8,32], index: 1, kind: input, shape index: {}]
  %s2 = inlined_call_operand.hbm [shape: f32[8,8,32], index: 2, kind: output, shape index: {}]
  %s3 = sld [smem:[#allocation0]]
  $region49: #{tpu_custom_call.1} parent=0
    _
  %s5 = ssub.s32 1, %s3
  %s6 = scalar_select 0, %s5, %s3
  $region1: #{tpu_custom_call.1} parent=0
    #allocation2 [shape = 'u8[32768]{0}', space=vmem, size = 0x8000, scoped, tag = 'input window, operand 0']
    #allocation3 [shape = 's32[2]{0}', space=sflag, size = 0x8, scoped, tag = 'scoped memory for tpu_custom_call.1']
    #allocation4 [shape = 's32[2]{0}', space=sflag, size = 0x8, scoped, tag = 'scoped memory for tpu_custom_call.1']
    #allocation5 [shape = 'u8[32768]{0}', space=vmem, size = 0x8000, scoped, tag = 'input window, operand 1']
    #allocation6 [shape = 's32[2]{0}', space=sflag, size = 0x8, scoped, tag = 'scoped memory for tpu_custom_call.1']
    #allocation7 [shape = 'u8[32768]{0}', space=vmem, size = 0x8000, scoped, tag = 'output window, operand 0']
    %7 = vsyncpa [#allocation3], 0
    %s8 = scalar_lea.sflag [#allocation3], 1
    %9 = vsyncpa %s8, 0
    %10 = vsyncpa [#allocation6], 0
    %s11 = scalar_lea.sflag [#allocation6], 1
    %12 = vsyncpa %s11, 0
    %13 = vsyncpa [#allocation4], 0
    %s14 = scalar_lea.sflag [#allocation4], 1
    %15 = vsyncpa %s14, 0
    loop: start=0, step=1, limit=4
    $region2: #{tpu_custom_call.1} parent=1 // loop_pre_header
      _
    $region3: #{tpu_custom_call.1} parent=1 // loop_header
      %s17 = sphi 0, %s21
      %p18 = scmp.ge.s32.totalorder %s17, 4
      %s24 = sphi 0, %s36
      %s25 = sphi 0, %s32
      %s26 = sphi 0, %s24
      %s27 = sphi 0, %s25
      %s28 = sphi 0, %s26
      %s29 = sphi 0, %s27
      %s41 = sphi 0, %s43
      %s44 = sphi 0, %s41
      %s45 = sphi 0, %s44
      %s61 = sphi 0, %s45
      %s67 = sphi 0, %s69
      %s70 = sphi 0, %s67
      %s71 = sphi 0, %s70
      %s87 = sphi 0, %s71
      %s95 = sphi 0, %s97
      %s98 = sphi 0, %s95
      %s99 = sphi 0, %s98
      %s115 = sphi 0, %s99
    $region4: #{tpu_custom_call.1} parent=1 // loop_header_branch
      %20 = sbr.rel (%p18) target = $region8
    $region5: #{tpu_custom_call.1} parent=1 // loop_body
      %s22 = ssub.s32 %s17, 1
      %s23 = ssub.s32 %s17, 2
      %s30 = sadd.s32 1, %s25
      %p31 = scmp.ge.s32.totalorder %s30, 1
      %s32 = scalar_select %p31, 0, %s30
      %s33 = sadd.s32 1, %s24
      %s34 = scalar_select %p31, %s33, %s24
      %p35 = scmp.ge.s32.totalorder %s34, 2
      %s36 = scalar_select %p35, 0, %s34
      %s37 = ssub.s32 %s24, %s36
      %s38 = ssub.s32 %s25, %s32
      %s39 = sor.u32 %s37, %s38
      %p40 = scmp.eq.s32.totalorder %s39, 0
      %s42 = sadd.s32 %s41, 1
      %s43 = scalar_select %p40, %s41, %s42
      %p46 = pneg %p40
      %p47 = scmp.eq.s32.totalorder %s17, 1
      %p48 = por %p46, %p47
      %p49 = scmp.ne.s32.totalorder %s41, %s44
      %p50 = scmp.eq.s32.totalorder %s17, 0
      %p51 = por %p49, %p50
      %p52 = scmp.ne.s32.totalorder %s41, %s44
      %p53 = scmp.eq.s32.totalorder %s22, 1
      %p54 = por %p52, %p53
      %p55 = scmp.ne.s32.totalorder %s44, %s45
      %p56 = scmp.eq.s32.totalorder %s22, 0
      %p57 = por %p55, %p56
      %p58 = scmp.ne.s32.totalorder %s44, %s45
      %p59 = scmp.eq.s32.totalorder %s23, 1
      %p60 = por %p58, %p59
      %p62 = scmp.ne.s32.totalorder %s45, %s61
      %p63 = scmp.eq.s32.totalorder %s23, 0
      %p64 = por %p62, %p63
      %s65 = ssub.s32 %s24, %s36
      %p66 = scmp.eq.s32.totalorder %s65, 0
      %s68 = sadd.s32 %s67, 1
      %s69 = scalar_select %p66, %s67, %s68
      %p72 = pneg %p66
      %p73 = scmp.eq.s32.totalorder %s17, 1
      %p74 = por %p72, %p73
      %p75 = scmp.ne.s32.totalorder %s67, %s70
      %p76 = scmp.eq.s32.totalorder %s17, 0
      %p77 = por %p75, %p76
      %p78 = scmp.ne.s32.totalorder %s67, %s70
      %p79 = scmp.eq.s32.totalorder %s22, 1
      %p80 = por %p78, %p79
      %p81 = scmp.ne.s32.totalorder %s70, %s71
      %p82 = scmp.eq.s32.totalorder %s22, 0
      %p83 = por %p81, %p82
      %p84 = scmp.ne.s32.totalorder %s70, %s71
      %p85 = scmp.eq.s32.totalorder %s23, 1
      %p86 = por %p84, %p85
      %p88 = scmp.ne.s32.totalorder %s71, %s87
      %p89 = scmp.eq.s32.totalorder %s23, 0
      %p90 = por %p88, %p89
      %s91 = ssub.s32 %s24, %s36
      %s92 = ssub.s32 %s25, %s32
      %s93 = sor.u32 %s91, %s92
      %p94 = scmp.eq.s32.totalorder %s93, 0
      %s96 = sadd.s32 %s95, 1
      %s97 = scalar_select %p94, %s95, %s96
      %p100 = pneg %p94
      %p101 = scmp.eq.s32.totalorder %s17, 1
      %p102 = por %p100, %p101
      %p103 = scmp.ne.s32.totalorder %s95, %s98
      %p104 = scmp.eq.s32.totalorder %s17, 0
      %p105 = por %p103, %p104
      %p106 = scmp.ne.s32.totalorder %s95, %s98
      %p107 = scmp.eq.s32.totalorder %s22, 1
      %p108 = por %p106, %p107
      %p109 = scmp.ne.s32.totalorder %s98, %s99
      %p110 = scmp.eq.s32.totalorder %s22, 0
      %p111 = por %p109, %p110
      %p112 = scmp.ne.s32.totalorder %s98, %s99
      %p113 = scmp.eq.s32.totalorder %s23, 1
      %p114 = por %p112, %p113
      %p116 = scmp.ne.s32.totalorder %s99, %s115
      %p117 = scmp.eq.s32.totalorder %s23, 0
      %p118 = por %p116, %p117
      %p119 = scmp.le.s32.totalorder 1, %s17
      %p120 = scmp.lt.s32.totalorder %s17, 3
      %p121 = pnand %p119, %p120
      %p122 = pneg %p121
      // Predicated region
      $region9: #{tpu_custom_call.1} parent=5 // pred_check
        _
      $region10: #{tpu_custom_call.1} parent=5 // pred_check_branch
        %124 = sbr.rel (%p121) target = $region12
      $region11: #{tpu_custom_call.1} parent=5 // pred_region
        %s125 = ssub.s32 %s17, 1
      $region12: #{tpu_custom_call.1} parent=5 // pred_fallthru
        _
      %p126 = scmp.lt.s32.totalorder %s17, 2
      // Predicated region
      $region13: #{tpu_custom_call.1} parent=5 // pred_check
        %p127 = pneg %p126
      $region14: #{tpu_custom_call.1} parent=5 // pred_check_branch
        %129 = sbr.rel (%p127) target = $region16
      $region15: #{tpu_custom_call.1} parent=5 // pred_region
        // Predicated region
        $region17: #{tpu_custom_call.1} parent=15 // pred_check
          %p130 = pneg %p51
        $region18: #{tpu_custom_call.1} parent=15 // pred_check_branch
          %132 = sbr.rel (%p130) target = $region20
        $region19: #{tpu_custom_call.1} parent=15 // pred_region
          %s133 = sand.u32 %s41, 1
          %s134 = scalar_lea.sflag [#allocation3], %s133
          %s135 = sand.u32 %s41, 1
          %s136 = smul.addr %s135, 32
          %s137 = scalar_lea.vmem [#allocation2], %s136
          %s138 = smul.u32 4, %s24
          %s140 = ssub.s32 512, 512
          %141 = vsyncadd %s134, %s140
          %s142 = sadd.s32 %s25, %s138
          %s143 = smul.addr %s142, 128
          %s144 = scalar_lea.hbm %s0, %s143
          %s145 = sshll.u32 %s137, 4
          %s146 = int_to_ptr.vmem [resolvable:$true] %s145
          %151 = dma.hbm_to_vmem [thread:$0]  %s144, 512, %s146, %s134, 128, 128, 8
        $region20: #{tpu_custom_call.1} parent=15 // pred_fallthru
          _
        // Predicated region
        $region21: #{tpu_custom_call.1} parent=15 // pred_check
          %p152 = pneg %p77
        $region22: #{tpu_custom_call.1} parent=15 // pred_check_branch
          %154 = sbr.rel (%p152) target = $region24
        $region23: #{tpu_custom_call.1} parent=15 // pred_region
          %s155 = sand.u32 %s67, 1
          %s156 = scalar_lea.sflag [#allocation6], %s155
          %s157 = sand.u32 %s67, 1
          %s158 = smul.addr %s157, 32
          %s159 = scalar_lea.vmem [#allocation5], %s158
          %s160 = smul.u32 4, %s24
          %s162 = ssub.s32 512, 512
          %163 = vsyncadd %s156, %s162
          %s164 = smul.addr %s160, 128
          %s165 = scalar_lea.hbm %s1, %s164
          %s166 = sshll.u32 %s159, 4
          %s167 = int_to_ptr.vmem [resolvable:$true] %s166
          %172 = dma.hbm_to_vmem [thread:$0]  %s165, 512, %s167, %s156, 128, 128, 8
        $region24: #{tpu_custom_call.1} parent=15 // pred_fallthru
          _
      $region16: #{tpu_custom_call.1} parent=5 // pred_fallthru
        _
      %p173 = scmp.le.s32.totalorder 1, %s17
      %p174 = scmp.lt.s32.totalorder %s17, 3
      %p175 = pnand %p173, %p174
      %p176 = pneg %p175
      // Predicated region
      $region25: #{tpu_custom_call.1} parent=5 // pred_check
        _
      $region26: #{tpu_custom_call.1} parent=5 // pred_check_branch
        %178 = sbr.rel (%p175) target = $region28
      $region27: #{tpu_custom_call.1} parent=5 // pred_region
        %s179 = ssub.s32 %s17, 1
        %s180 = sand.u32 %s44, 1
        %s181 = scalar_lea.sflag [#allocation3], %s180
        %s182 = sand.u32 %s44, 1
        %s183 = smul.addr %s182, 32
        %s184 = scalar_lea.vmem [#allocation2], %s183
        // Predicated region
        $region29: #{tpu_custom_call.1} parent=27 // pred_check
          %p185 = pneg %p57
        $region30: #{tpu_custom_call.1} parent=27 // pred_check_branch
          %187 = sbr.rel (%p185) target = $region32
        $region31: #{tpu_custom_call.1} parent=27 // pred_region
          %188 = dma.done %s181, 512
        $region32: #{tpu_custom_call.1} parent=27 // pred_fallthru
          _
        %s189 = sand.u32 %s70, 1
        %s190 = scalar_lea.sflag [#allocation6], %s189
        %s191 = sand.u32 %s70, 1
        %s192 = smul.addr %s191, 32
        %s193 = scalar_lea.vmem [#allocation5], %s192
        // Predicated region
        $region33: #{tpu_custom_call.1} parent=27 // pred_check
          %p194 = pneg %p83
        $region34: #{tpu_custom_call.1} parent=27 // pred_check_branch
          %196 = sbr.rel (%p194) target = $region36
        $region35: #{tpu_custom_call.1} parent=27 // pred_region
          %197 = dma.done %s190, 512
        $region36: #{tpu_custom_call.1} parent=27 // pred_fallthru
          _
        %s198 = sand.u32 %s44, 1
        %s199 = scalar_lea.sflag [#allocation3], %s198
        %s200 = sand.u32 %s44, 1
        %s201 = smul.addr %s200, 32
        %s202 = scalar_lea.vmem [#allocation2], %s201
        %p203 = pneg %p57
        %p204 = pneg %p54
        %s205 = sand.u32 %s70, 1
        %s206 = scalar_lea.sflag [#allocation6], %s205
        %s207 = sand.u32 %s70, 1
        %s208 = smul.addr %s207, 32
        %s209 = scalar_lea.vmem [#allocation5], %s208
        %p210 = pneg %p83
        %p211 = pneg %p80
        %p212 = pneg %p111
        %p213 = pneg %p108
        %s214 = sand.u32 %s98, 1
        %s215 = scalar_lea.sflag [#allocation4], %s214
        %s216 = sand.u32 %s98, 1
        %s217 = smul.addr %s216, 32
        %s218 = scalar_lea.vmem [#allocation7], %s217
        %s219 = smul.u32 4, %s26
        %s220 = smul.u32 4, %s26
        %s221 = smul.u32 4, %s26
        %v222 = vld [vmem:[%s184] sm:$0xff]
        %v223 = vld [vmem:[%s184 + $0x8] sm:$0xff]
        %v224 = vld [vmem:[%s184 + $0x10] sm:$0xff]
        %v225 = vld [vmem:[%s184 + $0x18] sm:$0xff]
        %v226 = vld [vmem:[%s193] sm:$0xff]
        %v227 = vld [vmem:[%s193 + $0x8] sm:$0xff]
        %v228 = vld [vmem:[%s193 + $0x10] sm:$0xff]
        %v229 = vld [vmem:[%s193 + $0x18] sm:$0xff]
        %vm230 = vcmask 64512
        %v232 = vsel %vm230, %v222, 0
        %234 = vmatprep.subr.mxu0 0.0
        %235 = vmatpush1.msra.mxu0 %v226
        %236 = vmatprep.subr.mxu0 0.0
        %237 = vmatpush1.msra.mxu0 0.0
        %238 = vmatprep.subr.mxu0 0.0
        %239 = vmatpush1.msra.mxu0 0.0
        %240 = vmatprep.subr.mxu0 0.0
        %241 = vmatpush1.msra.mxu0 0.0
        %242 = vmatprep.subr.mxu0 0.0
        %243 = vmatpush1.msra.mxu0 0.0
        %244 = vmatprep.subr.mxu0 0.0
        %245 = vmatpush1.msra.mxu0 0.0
        %246 = vmatprep.subr.mxu0 0.0
        %247 = vmatpush1.msra.mxu0 0.0
        %248 = vmatprep.subr.mxu0 0.0
        %249 = vmatpush1.msra.mxu0 0.0
        %250 = vmatprep.subr.mxu0 0.0
        %251 = vmatpush1.msra.mxu0 0.0
        %252 = vmatprep.subr.mxu0 0.0
        %253 = vmatpush1.msra.mxu0 0.0
        %254 = vmatprep.subr.mxu0 0.0
        %255 = vmatpush1.msra.mxu0 0.0
        %256 = vmatprep.subr.mxu0 0.0
        %257 = vmatpush1.msra.mxu0 0.0
        %258 = vmatprep.subr.mxu0 0.0
        %259 = vmatpush1.msra.mxu0 0.0
        %260 = vmatprep.subr.mxu0 0.0
        %261 = vmatpush1.msra.mxu0 0.0
        %262 = vmatprep.subr.mxu0 0.0
        %263 = vmatpush1.msra.mxu0 0.0
        %264 = vmatprep.subr.mxu0 0.0
        %265 = vmatpush1.msra.mxu0 0.0
        %266 = vmatprep.subr.mxu0 0.0
        %267 = vmatpush1.msra.mxu0 0.0
        %268 = vmatprep.subr.mxu0 0.0
        %269 = vmatpush1.msra.mxu0 0.0
        %270 = vmatprep.subr.mxu0 0.0
        %271 = vmatpush1.msra.mxu0 0.0
        %272 = vmatprep.subr.mxu0 0.0
        %273 = vmatpush1.msra.mxu0 0.0
        %274 = vmatprep.subr.mxu0 0.0
        %275 = vmatpush1.msra.mxu0 0.0
        %276 = vmatprep.subr.mxu0 0.0
        %277 = vmatpush1.msra.mxu0 0.0
        %278 = vmatprep.subr.mxu0 0.0
        %279 = vmatpush1.msra.mxu0 0.0
        %280 = vmatprep.subr.mxu0 0.0
        %281 = vmatpush1.msra.mxu0 0.0
        %282 = vmatprep.subr.mxu0 0.0
        %283 = vmatpush1.msra.mxu0 0.0
        %284 = vmatprep.subr.mxu0 0.0
        %285 = vmatpush1.msra.mxu0 0.0
        %286 = vmatprep.subr.mxu0 0.0
        %287 = vmatpush1.msra.mxu0 0.0
        %288 = vmatprep.subr.mxu0 0.0
        %289 = vmatpush1.msra.mxu0 0.0
        %290 = vmatprep.subr.mxu0 0.0
        %291 = vmatpush1.msra.mxu0 0.0
        %292 = vmatprep.subr.mxu0 0.0
        %293 = vmatpush1.msra.mxu0 0.0
        %294 = vmatprep.subr.mxu0 0.0
        %295 = vmatpush1.msra.mxu0 0.0
        %296 = vmatprep.subr.mxu0 0.0
        %297 = vmatpush1.msra.mxu0 0.0
        %298 = vmatprep.mubr.f32.mxu0 0.0
        %299 = vmatmul.mubr.f32.gmra.mrb[0].mxu0 %v232
        %v300 = vpop.f32.mrb[0].mxu0
        %v301 = vadd.f32 0.0, %v300
        %v302 = vpop.f32.mrb[0].mxu0
        %303 = vdwg.mxu0
        %v305 = vsel %vm230, %v223, 0
        %307 = vmatprep.subr.mxu0 0.0
        %308 = vmatpush1.msra.mxu0 %v227
        %309 = vmatprep.subr.mxu0 0.0
        %310 = vmatpush1.msra.mxu0 0.0
        %311 = vmatprep.subr.mxu0 0.0
        %312 = vmatpush1.msra.mxu0 0.0
        %313 = vmatprep.subr.mxu0 0.0
        %314 = vmatpush1.msra.mxu0 0.0
        %315 = vmatprep.subr.mxu0 0.0
        %316 = vmatpush1.msra.mxu0 0.0
        %317 = vmatprep.subr.mxu0 0.0
        %318 = vmatpush1.msra.mxu0 0.0
        %319 = vmatprep.subr.mxu0 0.0
        %320 = vmatpush1.msra.mxu0 0.0
        %321 = vmatprep.subr.mxu0 0.0
        %322 = vmatpush1.msra.mxu0 0.0
        %323 = vmatprep.subr.mxu0 0.0
        %324 = vmatpush1.msra.mxu0 0.0
        %325 = vmatprep.subr.mxu0 0.0
        %326 = vmatpush1.msra.mxu0 0.0
        %327 = vmatprep.subr.mxu0 0.0
        %328 = vmatpush1.msra.mxu0 0.0
        %329 = vmatprep.subr.mxu0 0.0
        %330 = vmatpush1.msra.mxu0 0.0
        %331 = vmatprep.subr.mxu0 0.0
        %332 = vmatpush1.msra.mxu0 0.0
        %333 = vmatprep.subr.mxu0 0.0
        %334 = vmatpush1.msra.mxu0 0.0
        %335 = vmatprep.subr.mxu0 0.0
        %336 = vmatpush1.msra.mxu0 0.0
        %337 = vmatprep.subr.mxu0 0.0
        %338 = vmatpush1.msra.mxu0 0.0
        %339 = vmatprep.subr.mxu0 0.0
        %340 = vmatpush1.msra.mxu0 0.0
        %341 = vmatprep.subr.mxu0 0.0
        %342 = vmatpush1.msra.mxu0 0.0
        %343 = vmatprep.subr.mxu0 0.0
        %344 = vmatpush1.msra.mxu0 0.0
        %345 = vmatprep.subr.mxu0 0.0
        %346 = vmatpush1.msra.mxu0 0.0
        %347 = vmatprep.subr.mxu0 0.0
        %348 = vmatpush1.msra.mxu0 0.0
        %349 = vmatprep.subr.mxu0 0.0
        %350 = vmatpush1.msra.mxu0 0.0
        %351 = vmatprep.subr.mxu0 0.0
        %352 = vmatpush1.msra.mxu0 0.0
        %353 = vmatprep.subr.mxu0 0.0
        %354 = vmatpush1.msra.mxu0 0.0
        %355 = vmatprep.subr.mxu0 0.0
        %356 = vmatpush1.msra.mxu0 0.0
        %357 = vmatprep.subr.mxu0 0.0
        %358 = vmatpush1.msra.mxu0 0.0
        %359 = vmatprep.subr.mxu0 0.0
        %360 = vmatpush1.msra.mxu0 0.0
        %361 = vmatprep.subr.mxu0 0.0
        %362 = vmatpush1.msra.mxu0 0.0
        %363 = vmatprep.subr.mxu0 0.0
        %364 = vmatpush1.msra.mxu0 0.0
        %365 = vmatprep.subr.mxu0 0.0
        %366 = vmatpush1.msra.mxu0 0.0
        %367 = vmatprep.subr.mxu0 0.0
        %368 = vmatpush1.msra.mxu0 0.0
        %369 = vmatprep.subr.mxu0 0.0
        %370 = vmatpush1.msra.mxu0 0.0
        %371 = vmatprep.mubr.f32.mxu0 0.0
        %372 = vmatmul.mubr.f32.gmra.mrb[0].mxu0 %v305
        %v373 = vpop.f32.mrb[0].mxu0
        %v374 = vadd.f32 0.0, %v373
        %v375 = vpop.f32.mrb[0].mxu0
        %376 = vdwg.mxu0
        %v378 = vsel %vm230, %v224, 0
        %380 = vmatprep.subr.mxu0 0.0
        %381 = vmatpush1.msra.mxu0 %v228
        %382 = vmatprep.subr.mxu0 0.0
        %383 = vmatpush1.msra.mxu0 0.0
        %384 = vmatprep.subr.mxu0 0.0
        %385 = vmatpush1.msra.mxu0 0.0
        %386 = vmatprep.subr.mxu0 0.0
        %387 = vmatpush1.msra.mxu0 0.0
        %388 = vmatprep.subr.mxu0 0.0
        %389 = vmatpush1.msra.mxu0 0.0
        %390 = vmatprep.subr.mxu0 0.0
        %391 = vmatpush1.msra.mxu0 0.0
        %392 = vmatprep.subr.mxu0 0.0
        %393 = vmatpush1.msra.mxu0 0.0
        %394 = vmatprep.subr.mxu0 0.0
        %395 = vmatpush1.msra.mxu0 0.0
        %396 = vmatprep.subr.mxu0 0.0
        %397 = vmatpush1.msra.mxu0 0.0
        %398 = vmatprep.subr.mxu0 0.0
        %399 = vmatpush1.msra.mxu0 0.0
        %400 = vmatprep.subr.mxu0 0.0
        %401 = vmatpush1.msra.mxu0 0.0
        %402 = vmatprep.subr.mxu0 0.0
        %403 = vmatpush1.msra.mxu0 0.0
        %404 = vmatprep.subr.mxu0 0.0
        %405 = vmatpush1.msra.mxu0 0.0
        %406 = vmatprep.subr.mxu0 0.0
        %407 = vmatpush1.msra.mxu0 0.0
        %408 = vmatprep.subr.mxu0 0.0
        %409 = vmatpush1.msra.mxu0 0.0
        %410 = vmatprep.subr.mxu0 0.0
        %411 = vmatpush1.msra.mxu0 0.0
        %412 = vmatprep.subr.mxu0 0.0
        %413 = vmatpush1.msra.mxu0 0.0
        %414 = vmatprep.subr.mxu0 0.0
        %415 = vmatpush1.msra.mxu0 0.0
        %416 = vmatprep.subr.mxu0 0.0
        %417 = vmatpush1.msra.mxu0 0.0
        %418 = vmatprep.subr.mxu0 0.0
        %419 = vmatpush1.msra.mxu0 0.0
        %420 = vmatprep.subr.mxu0 0.0
        %421 = vmatpush1.msra.mxu0 0.0
        %422 = vmatprep.subr.mxu0 0.0
        %423 = vmatpush1.msra.mxu0 0.0
        %424 = vmatprep.subr.mxu0 0.0
        %425 = vmatpush1.msra.mxu0 0.0
        %426 = vmatprep.subr.mxu0 0.0
        %427 = vmatpush1.msra.mxu0 0.0
        %428 = vmatprep.subr.mxu0 0.0
        %429 = vmatpush1.msra.mxu0 0.0
        %430 = vmatprep.subr.mxu0 0.0
        %431 = vmatpush1.msra.mxu0 0.0
        %432 = vmatprep.subr.mxu0 0.0
        %433 = vmatpush1.msra.mxu0 0.0
        %434 = vmatprep.subr.mxu0 0.0
        %435 = vmatpush1.msra.mxu0 0.0
        %436 = vmatprep.subr.mxu0 0.0
        %437 = vmatpush1.msra.mxu0 0.0
        %438 = vmatprep.subr.mxu0 0.0
        %439 = vmatpush1.msra.mxu0 0.0
        %440 = vmatprep.subr.mxu0 0.0
        %441 = vmatpush1.msra.mxu0 0.0
        %442 = vmatprep.subr.mxu0 0.0
        %443 = vmatpush1.msra.mxu0 0.0
        %444 = vmatprep.mubr.f32.mxu0 0.0
        %445 = vmatmul.mubr.f32.gmra.mrb[0].mxu0 %v378
        %v446 = vpop.f32.mrb[0].mxu0
        %v447 = vadd.f32 0.0, %v446
        %v448 = vpop.f32.mrb[0].mxu0
        %449 = vdwg.mxu0
        %v451 = vsel %vm230, %v225, 0
        %453 = vmatprep.subr.mxu0 0.0
        %454 = vmatpush1.msra.mxu0 %v229
        %455 = vmatprep.subr.mxu0 0.0
        %456 = vmatpush1.msra.mxu0 0.0
        %457 = vmatprep.subr.mxu0 0.0
        %458 = vmatpush1.msra.mxu0 0.0
        %459 = vmatprep.subr.mxu0 0.0
        %460 = vmatpush1.msra.mxu0 0.0
        %461 = vmatprep.subr.mxu0 0.0
        %462 = vmatpush1.msra.mxu0 0.0
        %463 = vmatprep.subr.mxu0 0.0
        %464 = vmatpush1.msra.mxu0 0.0
        %465 = vmatprep.subr.mxu0 0.0
        %466 = vmatpush1.msra.mxu0 0.0
        %467 = vmatprep.subr.mxu0 0.0
        %468 = vmatpush1.msra.mxu0 0.0
        %469 = vmatprep.subr.mxu0 0.0
        %470 = vmatpush1.msra.mxu0 0.0
        %471 = vmatprep.subr.mxu0 0.0
        %472 = vmatpush1.msra.mxu0 0.0
        %473 = vmatprep.subr.mxu0 0.0
        %474 = vmatpush1.msra.mxu0 0.0
        %475 = vmatprep.subr.mxu0 0.0
        %476 = vmatpush1.msra.mxu0 0.0
        %477 = vmatprep.subr.mxu0 0.0
        %478 = vmatpush1.msra.mxu0 0.0
        %479 = vmatprep.subr.mxu0 0.0
        %480 = vmatpush1.msra.mxu0 0.0
        %481 = vmatprep.subr.mxu0 0.0
        %482 = vmatpush1.msra.mxu0 0.0
        %483 = vmatprep.subr.mxu0 0.0
        %484 = vmatpush1.msra.mxu0 0.0
        %485 = vmatprep.subr.mxu0 0.0
        %486 = vmatpush1.msra.mxu0 0.0
        %487 = vmatprep.subr.mxu0 0.0
        %488 = vmatpush1.msra.mxu0 0.0
        %489 = vmatprep.subr.mxu0 0.0
        %490 = vmatpush1.msra.mxu0 0.0
        %491 = vmatprep.subr.mxu0 0.0
        %492 = vmatpush1.msra.mxu0 0.0
        %493 = vmatprep.subr.mxu0 0.0
        %494 = vmatpush1.msra.mxu0 0.0
        %495 = vmatprep.subr.mxu0 0.0
        %496 = vmatpush1.msra.mxu0 0.0
        %497 = vmatprep.subr.mxu0 0.0
        %498 = vmatpush1.msra.mxu0 0.0
        %499 = vmatprep.subr.mxu0 0.0
        %500 = vmatpush1.msra.mxu0 0.0
        %501 = vmatprep.subr.mxu0 0.0
        %502 = vmatpush1.msra.mxu0 0.0
        %503 = vmatprep.subr.mxu0 0.0
        %504 = vmatpush1.msra.mxu0 0.0
        %505 = vmatprep.subr.mxu0 0.0
        %506 = vmatpush1.msra.mxu0 0.0
        %507 = vmatprep.subr.mxu0 0.0
        %508 = vmatpush1.msra.mxu0 0.0
        %509 = vmatprep.subr.mxu0 0.0
        %510 = vmatpush1.msra.mxu0 0.0
        %511 = vmatprep.subr.mxu0 0.0
        %512 = vmatpush1.msra.mxu0 0.0
        %513 = vmatprep.subr.mxu0 0.0
        %514 = vmatpush1.msra.mxu0 0.0
        %515 = vmatprep.subr.mxu0 0.0
        %516 = vmatpush1.msra.mxu0 0.0
        %517 = vmatprep.mubr.f32.mxu0 0.0
        %518 = vmatmul.mubr.f32.gmra.mrb[0].mxu0 %v451
        %v519 = vpop.f32.mrb[0].mxu0
        %v520 = vadd.f32 0.0, %v519
        %v521 = vpop.f32.mrb[0].mxu0
        %522 = vdwg.mxu0
        %vm523 = vcmask 261120
        %524 = vst.msk [vmem:[%s218] sm:$0xff] %vm523, %v301
        %525 = vst.msk [vmem:[%s218 + $0x8] sm:$0xff] %vm523, %v374
        %526 = vst.msk [vmem:[%s218 + $0x10] sm:$0xff] %vm523, %v447
        %527 = vst.msk [vmem:[%s218 + $0x18] sm:$0xff] %vm523, %v520
        %s528 = sand.u32 %s98, 1
        %s529 = scalar_lea.sflag [#allocation4], %s528
        %s530 = sand.u32 %s98, 1
        %s531 = smul.addr %s530, 32
        %s532 = scalar_lea.vmem [#allocation7], %s531
        // Predicated region
        $region37: #{tpu_custom_call.1} parent=27 // pred_check
          %p533 = pneg %p108
        $region38: #{tpu_custom_call.1} parent=27 // pred_check_branch
          %535 = sbr.rel (%p533) target = $region40
        $region39: #{tpu_custom_call.1} parent=27 // pred_region
          %s536 = smul.u32 4, %s26
          %s538 = ssub.s32 512, 512
          %539 = vsyncadd %s529, %s538
          %s540 = sadd.s32 %s27, %s536
          %s541 = smul.addr %s540, 128
          %s542 = scalar_lea.hbm %s2, %s541
          %s543 = sshll.u32 %s532, 4
          %s544 = int_to_ptr.vmem [resolvable:$true] %s543
          %549 = dma.vmem_to_hbm [thread:$0]  %s544, 512, %s542, %s529, 128, 128, 8
        $region40: #{tpu_custom_call.1} parent=27 // pred_fallthru
          _
      $region28: #{tpu_custom_call.1} parent=5 // pred_fallthru
        _
      %p550 = scmp.le.s32.totalorder 2, %s17
      // Predicated region
      $region41: #{tpu_custom_call.1} parent=5 // pred_check
        %p551 = pneg %p550
      $region42: #{tpu_custom_call.1} parent=5 // pred_check_branch
        %553 = sbr.rel (%p551) target = $region44
      $region43: #{tpu_custom_call.1} parent=5 // pred_region
        %s554 = ssub.s32 %s17, 2
        // Predicated region
        $region45: #{tpu_custom_call.1} parent=43 // pred_check
          %p555 = pneg %p114
        $region46: #{tpu_custom_call.1} parent=43 // pred_check_branch
          %557 = sbr.rel (%p555) target = $region48
        $region47: #{tpu_custom_call.1} parent=43 // pred_region
          %s558 = sand.u32 %s99, 1
          %s559 = scalar_lea.sflag [#allocation4], %s558
          %s560 = sand.u32 %s99, 1
          %s561 = smul.addr %s560, 32
          %s562 = scalar_lea.vmem [#allocation7], %s561
          %563 = dma.done %s559, 512
        $region48: #{tpu_custom_call.1} parent=43 // pred_fallthru
          _
      $region44: #{tpu_custom_call.1} parent=5 // pred_fallthru
        _
    $region6: #{tpu_custom_call.1} parent=1 // loop_footer
      %s21 = sadd.s32 1, %s17
    $region7: #{tpu_custom_call.1} parent=1 // loop_footer_branch
      %16 = sbr.rel target = $region3
    $region8: #{tpu_custom_call.1} parent=1 // loop_exit
      _
    %564 = vsyncpa [#allocation3], 1
    %s565 = scalar_lea.sflag [#allocation3], 1
    %566 = vsyncpa %s565, 1
    %567 = vsyncpa [#allocation6], 1
    %s568 = scalar_lea.sflag [#allocation6], 1
    %569 = vsyncpa %s568, 1
    %570 = vsyncpa [#allocation4], 1
    %s571 = scalar_lea.sflag [#allocation4], 1
    %572 = vsyncpa %s571, 1

</llo_original>
